<compile_context>
chip_gen: v5e
topology: v5e:2x2
jax: 0.10.0
libtpu: 0.0.40
codegen_flags: <defaults>
</compile_context>

<pallas_src>
import functools

import jax
import jax.numpy as jnp
from jax.experimental import pallas as pl
from jax.experimental.pallas import tpu as pltpu

_LANE = 128
_SUBLANE = 8
_TARGET_BLOCK_BYTES = 4 << 20     # ~4 MiB data blocks
_VMEM_LIMIT_BYTES = 32 << 20      # explicit scoped-VMEM budget (safe on v5e/v6e/v7x)
_SMALL_INPUT_BYTES = 1 << 20      # below this, plain XLA beats kernel launch cost


def _num_tensorcores() -> int:
    """Best-effort TensorCores-per-chip (2 on v7x, 1 on v5e/v6e).

    Perf-only heuristic: a wrong answer changes tiling, never correctness.
    """
    try:
        kind = jax.devices()[0].device_kind.lower()
        if "v7" in kind:
            return 2
    except Exception:
        pass
    return 1


def _normalize_kernel(x_ref, scale_ref, bias_ref, o_ref, *, block_rows):
    # x_ref:             (BR, BL) lane-dense tile of the flattened (N*C, H*W) input.
    # scale_ref/bias_ref: (R_pad, 1) fully-resident per-row 1/std and -mean/std
    #                     (constant index_map -> DMA'd to VMEM once for the grid).
    # Pure VALU mul + add; no divide (EUP) and no MXU involvement.
    r0 = pl.multiple_of(pl.program_id(0) * block_rows, block_rows)
    s = scale_ref[pl.ds(r0, block_rows), :]
    b = bias_ref[pl.ds(r0, block_rows), :]
    o_ref[...] = (x_ref[...] * s + b).astype(o_ref.dtype)


def _pick_blocks(R, L, itemsize, target_bytes, num_cores):
    """Choose a lane-dense (BR, BL) block of roughly `target_bytes`.

    Block dims are either the full array dim or a multiple of the packed
    (sublane, 128) tile, so the TPU tiling constraint is always satisfied;
    non-dividing blocks use Pallas boundary padding (safe for elementwise).
    """
    # Packed sublane tile: 8 rows for 32-bit, 16 for bf16, 32 for int8/fp8.
    sub = _SUBLANE * max(1, 4 // itemsize)

    # Lanes: full L if it fits the budget at the minimum row height, else the
    # largest multiple of 128 that fits.
    min_rows = R if R <= sub else sub
    max_lanes = max(_LANE, target_bytes // max(1, min_rows * itemsize))
    if L <= max_lanes:
        BL = L
    else:
        BL = max(_LANE, (max_lanes // _LANE) * _LANE)

    # Rows: as many as fit the budget, rounded to the packed sublane tile.
    rows_fit = max(1, target_bytes // max(1, BL * itemsize))
    if rows_fit >= R or R <= sub:
        BR = R
    else:
        BR = max(sub, (rows_fit // sub) * sub)

    if num_cores >= 2:
        # Make sure both TensorCores get work.  Prefer splitting the row axis
        # (keeps each block's HBM region fully contiguous); lane axis only
        # for tiny R.  Skipped entirely on 1-TC chips.
        if pl.cdiv(R, BR) * pl.cdiv(L, BL) == 1:
            if R >= 2 * sub:
                BR = sub * pl.cdiv(pl.cdiv(R, 2), sub)
            elif L >= 2 * _LANE:
                BL = _LANE * pl.cdiv(pl.cdiv(L, 2), _LANE)
        # Larger inputs: target >=8 grid steps (>=4 per core) so the
        # double-buffer pipeline reaches steady state.
        if R * L * itemsize >= 4 * target_bytes:
            while pl.cdiv(R, BR) * pl.cdiv(L, BL) < 8:
                if BL >= 2 * _LANE:
                    BL = _LANE * pl.cdiv(pl.cdiv(BL, 2), _LANE)
                elif BR >= 2 * sub:
                    BR = sub * pl.cdiv(pl.cdiv(BR, 2), sub)
                else:
                    break
    return BR, BL


def normalize(x: jax.Array, mean: jax.Array, std: jax.Array, *,
              min_pallas_bytes: int = _SMALL_INPUT_BYTES,
              target_block_bytes: int = _TARGET_BLOCK_BYTES) -> jax.Array:
    """(x - mean) / std with mean/std shaped (1, C, 1, 1), x shaped (N, C, H, W).

    Note: computed as x * (1/std) + (-mean/std); differs from sub/div by a
    couple of f32 ulps (reassociation), not bit-exact vs. the PyTorch module.
    """
    N, C, H, W = x.shape
    assert mean.shape == (1, C, 1, 1) and std.shape == (1, C, 1, 1)

    # Fold normalization into a fused multiply-add, hoisted out of the kernel.
    scale_c = (1.0 / std).reshape(C).astype(jnp.float32)
    bias_c = (-mean / std).reshape(C).astype(jnp.float32)

    itemsize = jnp.dtype(x.dtype).itemsize
    total_bytes = x.size * itemsize
    if total_bytes < min_pallas_bytes:
        # Tiny tensor: pallas_call launch + pipeline prologue would dominate;
        # let XLA fuse the elementwise op instead.
        scale4 = scale_c.reshape(1, C, 1, 1)
        bias4 = bias_c.reshape(1, C, 1, 1)
        return (x.astype(jnp.float32) * scale4 + bias4).astype(x.dtype)

    R, L = N * C, H * W
    x2 = x.reshape(R, L)

    BR, BL = _pick_blocks(R, L, itemsize, target_block_bytes, _num_tensorcores())
    grid = (pl.cdiv(R, BR), pl.cdiv(L, BL))

    # Per-row params (row r -> channel r % C), padded so the last (partial)
    # row block's pl.ds slice inside the kernel never reads out of bounds.
    R_pad = grid[0] * BR
    scale_rows = jnp.tile(scale_c, N).reshape(R, 1)
    bias_rows = jnp.tile(bias_c, N).reshape(R, 1)
    if R_pad > R:
        pad = ((0, R_pad - R), (0, 0))
        scale_rows = jnp.pad(scale_rows, pad, constant_values=1.0)
        bias_rows = jnp.pad(bias_rows, pad, constant_values=0.0)

    x_spec = pl.BlockSpec((BR, BL), lambda r, l: (r, l))
    out_spec = pl.BlockSpec((BR, BL), lambda r, l: (r, l))
    # Fully-resident params: full-array block, constant index_map => one DMA.
    param_spec = pl.BlockSpec((R_pad, 1), lambda r, l: (0, 0))

    out2 = pl.pallas_call(
        functools.partial(_normalize_kernel, block_rows=BR),
        out_shape=jax.ShapeDtypeStruct((R, L), x.dtype),
        grid_spec=pltpu.PrefetchScalarGridSpec(
            num_scalar_prefetch=0,
            grid=grid,
            in_specs=[x_spec, param_spec, param_spec],
            out_specs=out_spec,
        ),
        compiler_params=pltpu.CompilerParams(
            dimension_semantics=("parallel", "parallel"),
            vmem_limit_bytes=_VMEM_LIMIT_BYTES,
        ),
    )(x2, scale_rows, bias_rows)
    return out2.reshape(N, C, H, W)


if __name__ == "__main__":
    # Module __init__ implies C = 3 (mean/std reshaped to (1, 3, 1, 1)).
    key = jax.random.PRNGKey(0)
    k1, k2 = jax.random.split(key)
    C = 3
    mean_vals = jnp.array([0.485, 0.456, 0.406], dtype=jnp.float32)
    std_vals = jnp.array([0.229, 0.224, 0.225], dtype=jnp.float32)
    mean = mean_vals.reshape(1, C, 1, 1)
    std = std_vals.reshape(1, C, 1, 1)

    # Case 1: small shape, Pallas path forced (single-block grid).
    x1 = jax.random.normal(k1, (2, C, 16, 16), dtype=jnp.float32)
    out1 = jax.block_until_ready(normalize(x1, mean, std, min_pallas_bytes=0))
    ref1 = (x1 - mean) / std
    assert out1.shape == x1.shape and out1.dtype == x1.dtype
    assert jnp.allclose(out1, ref1, atol=1e-5, rtol=1e-5)

    # Case 2: multi-block grid (partial row/lane blocks + row-block > 0 param
    # slicing) by shrinking the block budget — still a small tensor.
    x2 = jax.random.normal(k2, (4, C, 64, 80), dtype=jnp.float32)
    out2 = jax.block_until_ready(
        normalize(x2, mean, std, min_pallas_bytes=0, target_block_bytes=64 << 10))
    ref2 = (x2 - mean) / std
    assert jnp.allclose(out2, ref2, atol=1e-5, rtol=1e-5)

    # Case 3: default small-input XLA fallback path.
    out3 = jax.block_until_ready(normalize(x1, mean, std))
    assert jnp.allclose(out3, ref1, atol=1e-5, rtol=1e-5)

    print("KERNEL_OK")
</pallas_src>

<mosaic_0001>
module attributes {stable_mosaic.version = 11 : i64} {
  func.func @_normalize_kernel(%arg0: i32, %arg1: i32, %arg2: memref<6x256xf32, #tpu.memory_space<vmem>>, %arg3: memref<6x1xf32, #tpu.memory_space<vmem>>, %arg4: memref<6x1xf32, #tpu.memory_space<vmem>>, %arg5: memref<6x256xf32, #tpu.memory_space<vmem>>) attributes {dimension_semantics = [#tpu.dimension_semantics<parallel>, #tpu.dimension_semantics<parallel>], iteration_bounds = array<i64: 1, 1>, scalar_prefetch = 0 : i64, scratch_operands = 0 : i64, tpu.core_type = #tpu.core_type<tc>, window_params = [{transform_indices = @transform_0, window_bounds = array<i64: 6, 256>}, {pipeline_mode = #tpu.pipeline_mode<synchronous>, transform_indices = @transform_1, window_bounds = array<i64: 6, 1>}, {pipeline_mode = #tpu.pipeline_mode<synchronous>, transform_indices = @transform_2, window_bounds = array<i64: 6, 1>}, {transform_indices = @transform_3, window_bounds = array<i64: 6, 256>}]} {
    %c6_i32 = arith.constant 6 : i32
    %0 = arith.muli %arg0, %c6_i32 : i32
    %1 = tpu.assume_multiple %0, 6 : i32
    %2 = arith.index_cast %1 : i32 to index
    %c0 = arith.constant 0 : index
    %3 = vector.load %arg3[%2, %c0] : memref<6x1xf32, #tpu.memory_space<vmem>>, vector<6x1xf32>
    %4 = arith.index_cast %1 : i32 to index
    %c0_0 = arith.constant 0 : index
    %5 = vector.load %arg4[%4, %c0_0] : memref<6x1xf32, #tpu.memory_space<vmem>>, vector<6x1xf32>
    %c0_1 = arith.constant 0 : index
    %c0_2 = arith.constant 0 : index
    %6 = vector.load %arg2[%c0_1, %c0_2] : memref<6x256xf32, #tpu.memory_space<vmem>>, vector<6x256xf32>
    %7 = vector.broadcast %3 : vector<6x1xf32> to vector<6x256xf32>
    %8 = arith.mulf %6, %7 : vector<6x256xf32>
    %9 = vector.broadcast %5 : vector<6x1xf32> to vector<6x256xf32>
    %10 = arith.addf %8, %9 : vector<6x256xf32>
    %c0_3 = arith.constant 0 : index
    %c0_4 = arith.constant 0 : index
    %11 = vector.load %arg5[%c0_3, %c0_4] : memref<6x256xf32, #tpu.memory_space<vmem>>, vector<6x256xf32>
    tpu.vector_store %arg5[%c0_3, %c0_4], %10 {strides = array<i32>} : memref<6x256xf32, #tpu.memory_space<vmem>>, vector<6x256xf32>,
    return
  }
  func.func @transform_0(%arg0: i32, %arg1: i32) -> (i32, i32) {
    %c0_i32 = arith.constant 0 : i32
    return %arg0, %arg1 : i32, i32
  }
  func.func @transform_1(%arg0: i32, %arg1: i32) -> (i32, i32) {
    %c0_i32 = arith.constant 0 : i32
    %c0_i32_0 = arith.constant 0 : i32
    %c0_i32_1 = arith.constant 0 : i32
    return %c0_i32, %c0_i32_0 : i32, i32
  }
  func.func @transform_2(%arg0: i32, %arg1: i32) -> (i32, i32) {
    %c0_i32 = arith.constant 0 : i32
    %c0_i32_0 = arith.constant 0 : i32
    %c0_i32_1 = arith.constant 0 : i32
    return %c0_i32, %c0_i32_0 : i32, i32
  }
  func.func @transform_3(%arg0: i32, %arg1: i32) -> (i32, i32) {
    %c0_i32 = arith.constant 0 : i32
    return %arg0, %arg1 : i32, i32
  }
}

</mosaic_0001>

<llo_original>
// kernel: tpu_custom_call.1
$region0: #{tpu_custom_call.1}
  #allocation0 [shape = 'u32[]', space=smem, size = 0x4, offset = 0x4, fixed_abs, tag = 'smem constant byte address 0x4 - core index']
  #allocation1 [shape = 'u32[72,128]{1,0:T(1,128)}', space=vmem, size = 0x9000, scoped, tag = 'internal scratch']
  %s0 = inlined_call_operand.vmem [shape: f32[6,256], index: 0, kind: input, shape index: {}]
  %s1 = inlined_call_operand.vmem [shape: f32[6,1], index: 1, kind: input, shape index: {}]
  %s2 = inlined_call_operand.vmem [shape: f32[6,1], index: 2, kind: input, shape index: {}]
  %s3 = inlined_call_operand.hbm [shape: f32[6,256], index: 3, kind: output, shape index: {}]
  %s4 = sld [smem:[#allocation0]]
  $region22: #{tpu_custom_call.1} parent=0
    _
  %s6 = ssub.s32 1, %s4
  %s7 = scalar_select 0, %s6, %s4
  $region1: #{tpu_custom_call.1} parent=0
    #allocation2 [shape = 'u8[8192]{0}', space=vmem, size = 0x2000, scoped, tag = 'output window, operand 0, single buffered']
    #allocation3 [shape = 's32[1]{0}', space=sflag, size = 0x4, scoped, tag = 'scoped memory for tpu_custom_call.1']
    %8 = vsyncpa [#allocation3], 0
    // Predicated region
    $region2: #{tpu_custom_call.1} parent=1 // pred_check
      _
    $region3: #{tpu_custom_call.1} parent=1 // pred_check_branch
      %10 = sbr.rel (0) target = $region5
    $region4: #{tpu_custom_call.1} parent=1 // pred_region
      _
    $region5: #{tpu_custom_call.1} parent=1 // pred_fallthru
      _
    // Predicated region
    $region6: #{tpu_custom_call.1} parent=1 // pred_check
      _
    $region7: #{tpu_custom_call.1} parent=1 // pred_check_branch
      %12 = sbr.rel (0) target = $region9
    $region8: #{tpu_custom_call.1} parent=1 // pred_region
      _
    $region9: #{tpu_custom_call.1} parent=1 // pred_fallthru
      _
    // Predicated region
    $region10: #{tpu_custom_call.1} parent=1 // pred_check
      _
    $region11: #{tpu_custom_call.1} parent=1 // pred_check_branch
      %14 = sbr.rel (0) target = $region13
    $region12: #{tpu_custom_call.1} parent=1 // pred_region
      _
    $region13: #{tpu_custom_call.1} parent=1 // pred_fallthru
      _
    %s15 = smul.u32 0, 6
    %s16 = scalar_lea.vmem %s1, %s15
    %v17 = vld [vmem:[%s16] sm:$0x3f]
    %s18 = scalar_lea.vmem %s2, %s15
    %v19 = vld [vmem:[%s18] sm:$0x3f]
    %v20 = vld [vmem:[%s0] sm:$0x3f]
    %v21 = vld [vmem:[%s0 + $0x8] sm:$0x3f]
    %23 = vset.pattern.permute.xlu0 0
    %24 = vperm.xlu0 %23, %v17
    %v25 = vpop.permute.xlu0 %24
    %v27 = vmul.f32 %v20, %v25
    %v28 = vmul.f32 %v21, %v25
    %30 = vset.pattern.permute.xlu0 0
    %31 = vperm.xlu0 %30, %v19
    %v32 = vpop.permute.xlu0 %31
    %v34 = vadd.f32 %v27, %v32
    %v35 = vadd.f32 %v28, %v32
    %36 = vst [vmem:[#allocation2] sm:$0x3f] %v34
    %37 = vst [vmem:[#allocation2 + $0x8] sm:$0x3f] %v35
    // Predicated region
    $region14: #{tpu_custom_call.1} parent=1 // pred_check
      _
    $region15: #{tpu_custom_call.1} parent=1 // pred_check_branch
      %39 = sbr.rel (0) target = $region17
    $region16: #{tpu_custom_call.1} parent=1 // pred_region
      %41 = vsyncadd [#allocation3], 0
      %s43 = sshll.u32 [#allocation2], 4
      %s44 = int_to_ptr.vmem [resolvable:$true] %s43
      %s45 = sshll.u32 %s3, 4
      %s46 = int_to_ptr.hbm [resolvable:$true] %s45
      %48 = dma.vmem_to_hbm [thread:$0]  %s44, 256, %s46, [#allocation3]
    $region17: #{tpu_custom_call.1} parent=1 // pred_fallthru
      _
    // Predicated region
    $region18: #{tpu_custom_call.1} parent=1 // pred_check
      _
    $region19: #{tpu_custom_call.1} parent=1 // pred_check_branch
      %50 = sbr.rel (0) target = $region21
    $region20: #{tpu_custom_call.1} parent=1 // pred_region
      %52 = dma.done [#allocation3], 256
    $region21: #{tpu_custom_call.1} parent=1 // pred_fallthru
      _
    %53 = vsyncpa [#allocation3], 1

</llo_original>
